<compile_context>
chip_gen: v7x
topology: tpu7x:2x2x1
jax: 0.10.0
libtpu: 0.0.40
codegen_flags: <defaults>
</compile_context>

<pallas_src>
from functools import partial

import numpy as np
import jax
import jax.numpy as jnp
from jax import lax
from jax.experimental import pallas as pl
from jax.experimental.pallas import tpu as pltpu

LANE = 128             # TPU lane width
SUBLANE = 8            # f32 sublanes per vreg
MAX_BLOCK_ROWS = 2048  # (2048,128) f32 = 1 MiB per pipelined input block
                       # (raise to 4096 on v7x for a few extra % of HBM BW)


def _round_up(a, b):
    return ((a + b - 1) // b) * b


def _rosenbrock_kernel(x_ref, o_ref, *, m, block_elems, steps_per_split):
    # x_ref: (block_rows, 128) f32 tile holding a contiguous slab of the
    #        (padded) parameter vector in row-major order.
    # o_ref: (8, 128) f32 partial-sum tile, resident across the reduction grid
    #        axis (one tile per "parallel" split / TensorCore).
    c = pl.program_id(0)          # parallel split (megacore) index
    s = pl.program_id(1)          # reduction step within the split

    @pl.when(s == 0)
    def _():
        o_ref[...] = jnp.zeros_like(o_ref)

    x = x_ref[...]
    rows = x.shape[0]

    # Build the x[i+1] view of this flat slab entirely on-chip:
    #   lanes 0..126 take the next lane of the same row,
    #   lane 127 takes lane 0 of the next row.
    nxt_lane = pltpu.roll(x, shift=LANE - 1, axis=1)         # [r,j] -> x[r,(j+1)%128]
    nxt_row = pltpu.roll(nxt_lane, shift=rows - 1, axis=0)   # [r,j] -> x[(r+1)%rows,(j+1)%128]
    lane = lax.broadcasted_iota(jnp.int32, x.shape, 1)
    row = lax.broadcasted_iota(jnp.int32, x.shape, 0)
    x_next = jnp.where(lane == LANE - 1, nxt_row, nxt_lane)
    # NOTE: the very last element of the block ([rows-1, 127]) wraps around to
    # the block's first element; the wrapper adds a static scalar correction.

    d = x_next - x * x
    e = 1.0 - x
    term = 100.0 * (d * d) + e * e

    # Mask terms past the last valid Rosenbrock index (i < num_var - 1).
    blk = c * steps_per_split + s
    flat = blk * block_elems + row * LANE + lane
    term = jnp.where(flat < m, term, 0.0)

    # Accumulate into the resident (8,128) tile with pure VPU adds.
    o_ref[...] += jnp.sum(term.reshape(rows // SUBLANE, SUBLANE, LANE), axis=0)


def _term(a, b):
    d = b - a * a
    e = 1.0 - a
    return 100.0 * (d * d) + e * e


@partial(jax.jit, static_argnames=("max_block_rows",))
def benchmark_func_forward(params, max_block_rows=MAX_BLOCK_ROWS):
    """params: (num_var,) parameter vector (plays the nn.Parameter role).
    Returns scalar float32 == rosenbrock(params) == Benchmark_func.forward()."""
    n = params.shape[0]
    m = n - 1                                  # number of Rosenbrock terms
    x = params.astype(jnp.float32)

    # ---- layout: pad the flat vector into (rows, 128) full vregs -----------
    rows_min = max(SUBLANE, _round_up(pl.cdiv(max(n, 1), LANE), SUBLANE))
    nblocks = pl.cdiv(rows_min, max_block_rows)
    if nblocks > 1 and nblocks % 2 == 1:       # even block count -> 2-way core split
        nblocks += 1
    block_rows = _round_up(pl.cdiv(rows_min, nblocks), SUBLANE)
    rows = block_rows * nblocks
    total = rows * LANE
    block_elems = block_rows * LANE

    pad = total - n
    x_flat = jnp.concatenate([x, jnp.zeros((pad,), jnp.float32)]) if pad else x
    x2d = x_flat.reshape(rows, LANE)

    # ---- grid: (parallel split, reduction steps) ----------------------------
    n_split = 2 if (nblocks >= 2 and nblocks % 2 == 0) else 1
    steps_per_split = nblocks // n_split
    grid = (n_split, steps_per_split)

    kernel = partial(_rosenbrock_kernel, m=m, block_elems=block_elems,
                     steps_per_split=steps_per_split)
    cost = pl.CostEstimate(flops=10 * total, transcendentals=0,
                           bytes_accessed=total * 4 + n_split * SUBLANE * LANE * 4)

    partials = pl.pallas_call(
        kernel,
        out_shape=jax.ShapeDtypeStruct((n_split * SUBLANE, LANE), jnp.float32),
        grid=grid,
        in_specs=[pl.BlockSpec((block_rows, LANE),
                               lambda c, s: (c * steps_per_split + s, 0))],
        out_specs=pl.BlockSpec((SUBLANE, LANE), lambda c, s: (c, 0)),
        compiler_params=pltpu.CompilerParams(
            dimension_semantics=("parallel", "arbitrary"),
            vmem_limit_bytes=32 * 1024 * 1024),
        cost_estimate=cost,
    )(x2d)

    result = jnp.sum(partials)

    # ---- static scalar correction for the per-block boundary element -------
    # The last element of block b used x_flat[b*block_elems] as its "next"
    # value instead of x_flat[end+1].  All indices are Python-static.
    ends = np.arange(1, nblocks, dtype=np.int64) * block_elems - 1
    ends = ends[ends < m]
    if ends.size:
        a = x_flat[ends]
        right = x_flat[ends + 1]
        wrapped = x_flat[ends + 1 - block_elems]
        result = result + jnp.sum(_term(a, right) - _term(a, wrapped))

    return result


def _rosenbrock_ref(x):
    x = x.astype(jnp.float32)
    return jnp.sum(100.0 * (x[1:] - x[:-1] ** 2) ** 2 + (1.0 - x[:-1]) ** 2)


if __name__ == "__main__":
    # Deterministic "init_point" (plays the role of the nn.Parameter init).
    num_var = 128
    init_point = jax.random.normal(jax.random.PRNGKey(0), (num_var,),
                                   dtype=jnp.float32) * 0.5
    y = jax.block_until_ready(benchmark_func_forward(init_point))
    y_ref = _rosenbrock_ref(init_point)
    assert jnp.allclose(y, y_ref, rtol=1e-4, atol=1e-3), (y, y_ref)

    # Padding path: size not a multiple of 128.
    init2 = jax.random.normal(jax.random.PRNGKey(1), (200,), jnp.float32) * 0.5
    y2 = jax.block_until_ready(benchmark_func_forward(init2))
    y2_ref = _rosenbrock_ref(init2)
    assert jnp.allclose(y2, y2_ref, rtol=1e-4, atol=1e-3), (y2, y2_ref)

    # Multi-block path (block-boundary correction + 2-way parallel split),
    # forced cheap via a tiny max_block_rows.
    init3 = jax.random.normal(jax.random.PRNGKey(2), (5000,), jnp.float32) * 0.5
    y3 = jax.block_until_ready(benchmark_func_forward(init3, max_block_rows=8))
    y3_ref = _rosenbrock_ref(init3)
    assert jnp.allclose(y3, y3_ref, rtol=1e-4, atol=1e-3), (y3, y3_ref)

    print("KERNEL_OK")
</pallas_src>

<mosaic_0001>
module attributes {stable_mosaic.version = 11 : i64} {
  func.func @_rosenbrock_kernel(%arg0: i32, %arg1: i32, %arg2: memref<8x128xf32, #tpu.memory_space<vmem>>, %arg3: memref<8x128xf32, #tpu.memory_space<vmem>>) attributes {dimension_semantics = [#tpu.dimension_semantics<parallel>, #tpu.dimension_semantics<arbitrary>], iteration_bounds = array<i64: 1, 1>, scalar_prefetch = 0 : i64, scratch_operands = 0 : i64, tpu.core_type = #tpu.core_type<tc>, window_params = [{transform_indices = @transform_0, window_bounds = array<i64: 8, 128>}, {transform_indices = @transform_1, window_bounds = array<i64: 8, 128>}]} {
    %c0_i32 = arith.constant 0 : i32
    %0 = arith.cmpi eq, %arg1, %c0_i32 : i32
    %1 = arith.extui %0 : i1 to i32
    %c0_i32_0 = arith.constant 0 : i32
    %2 = arith.cmpi ne, %1, %c0_i32_0 : i32
    scf.if %2 {
      %cst_11 = arith.constant 0.000000e+00 : f32
      %37 = vector.broadcast %cst_11 : f32 to vector<8x128xf32>
      %c0_12 = arith.constant 0 : index
      %c0_13 = arith.constant 0 : index
      %38 = vector.load %arg3[%c0_12, %c0_13] : memref<8x128xf32, #tpu.memory_space<vmem>>, vector<8x128xf32>
      tpu.vector_store %arg3[%c0_12, %c0_13], %37 {strides = array<i32>} : memref<8x128xf32, #tpu.memory_space<vmem>>, vector<8x128xf32>,
    } else {
    }
    %c0 = arith.constant 0 : index
    %c0_1 = arith.constant 0 : index
    %3 = vector.load %arg2[%c0, %c0_1] : memref<8x128xf32, #tpu.memory_space<vmem>>, vector<8x128xf32>
    %c127_i32 = arith.constant 127 : i32
    %4 = tpu.dynamic_rotate %3 by %c127_i32 dim 1 : vector<8x128xf32>, i32 -> vector<8x128xf32>
    %c7_i32 = arith.constant 7 : i32
    %5 = tpu.dynamic_rotate %4 by %c7_i32 dim 0 : vector<8x128xf32>, i32 -> vector<8x128xf32>
    %6 = tpu.iota {dimensions = array<i32: 1>} : vector<8x128xi32>
    %7 = tpu.iota {dimensions = array<i32: 0>} : vector<8x128xi32>
    %c127_i32_2 = arith.constant 127 : i32
    %8 = vector.broadcast %c127_i32_2 : i32 to vector<8x128xi32>
    %9 = arith.cmpi eq, %6, %8 : vector<8x128xi32>
    %10 = arith.select %9, %5, %4 : vector<8x128xi1>, vector<8x128xf32>
    %11 = arith.mulf %3, %3 : vector<8x128xf32>
    %12 = arith.subf %10, %11 : vector<8x128xf32>
    %cst = arith.constant 1.000000e+00 : f32
    %13 = vector.broadcast %cst : f32 to vector<8x128xf32>
    %14 = arith.subf %13, %3 : vector<8x128xf32>
    %15 = arith.mulf %12, %12 : vector<8x128xf32>
    %cst_3 = arith.constant 1.000000e+02 : f32
    %16 = vector.broadcast %cst_3 : f32 to vector<8x128xf32>
    %17 = arith.mulf %16, %15 : vector<8x128xf32>
    %18 = arith.mulf %14, %14 : vector<8x128xf32>
    %19 = arith.addf %17, %18 : vector<8x128xf32>
    %c1_i32 = arith.constant 1 : i32
    %20 = arith.muli %arg0, %c1_i32 : i32
    %21 = arith.addi %20, %arg1 : i32
    %c1024_i32 = arith.constant 1024 : i32
    %22 = arith.muli %21, %c1024_i32 : i32
    %c128_i32 = arith.constant 128 : i32
    %23 = vector.broadcast %c128_i32 : i32 to vector<8x128xi32>
    %24 = arith.muli %7, %23 : vector<8x128xi32>
    %25 = vector.broadcast %22 : i32 to vector<8x128xi32>
    %26 = arith.addi %25, %24 : vector<8x128xi32>
    %27 = arith.addi %26, %6 : vector<8x128xi32>
    %c127_i32_4 = arith.constant 127 : i32
    %28 = vector.broadcast %c127_i32_4 : i32 to vector<8x128xi32>
    %29 = arith.cmpi slt, %27, %28 : vector<8x128xi32>
    %cst_5 = arith.constant 0.000000e+00 : f32
    %30 = vector.broadcast %cst_5 : f32 to vector<8x128xf32>
    %31 = arith.select %29, %19, %30 : vector<8x128xi1>, vector<8x128xf32>
    %c0_6 = arith.constant 0 : index
    %c0_7 = arith.constant 0 : index
    %32 = vector.load %arg3[%c0_6, %c0_7] : memref<8x128xf32, #tpu.memory_space<vmem>>, vector<8x128xf32>
    %33 = vector.shape_cast %31 : vector<8x128xf32> to vector<1x8x128xf32>
    %cst_8 = arith.constant dense<0.000000e+00> : vector<8x128xf32>
    %34 = vector.multi_reduction <add>, %33, %cst_8 [0] : vector<1x8x128xf32> to vector<8x128xf32>
    %35 = arith.addf %32, %34 : vector<8x128xf32>
    %c0_9 = arith.constant 0 : index
    %c0_10 = arith.constant 0 : index
    %36 = vector.load %arg3[%c0_9, %c0_10] : memref<8x128xf32, #tpu.memory_space<vmem>>, vector<8x128xf32>
    tpu.vector_store %arg3[%c0_9, %c0_10], %35 {strides = array<i32>} : memref<8x128xf32, #tpu.memory_space<vmem>>, vector<8x128xf32>,
    return
  }
  func.func @transform_0(%arg0: i32, %arg1: i32) -> (i32, i32) {
    %c1_i32 = arith.constant 1 : i32
    %0 = arith.muli %arg0, %c1_i32 : i32
    %1 = arith.addi %0, %arg1 : i32
    %c0_i32 = arith.constant 0 : i32
    %c0_i32_0 = arith.constant 0 : i32
    return %1, %c0_i32 : i32, i32
  }
  func.func @transform_1(%arg0: i32, %arg1: i32) -> (i32, i32) {
    %c0_i32 = arith.constant 0 : i32
    %c0_i32_0 = arith.constant 0 : i32
    return %arg0, %c0_i32 : i32, i32
  }
}

</mosaic_0001>

<llo_original>
// kernel: benchmark_func_forward.1
$region0: #{benchmark_func_forward.1}
  #allocation0 [shape = 'u32[]', space=smem, size = 0x4, offset = 0x4, fixed_abs, tag = 'smem constant byte address 0x4 - core index']
  #allocation1 [shape = 'u32[144,128]{1,0:T(1,128)}', space=vmem, size = 0x12000, scoped, tag = 'internal scratch']
  %s0 = inlined_call_operand.vmem [shape: f32[8,128], index: 0, kind: input, shape index: {}]
  %s1 = inlined_call_operand.vmem [shape: f32[8,128], index: 1, kind: output, shape index: {}]
  %s2 = sld [smem:[#allocation0]]
  $region18: #{benchmark_func_forward.1} parent=0
    _
  %s4 = ssub.s32 1, %s2
  %s5 = scalar_select 0, %s4, %s2
  // Predicated region
  $region2: #{benchmark_func_forward.1} parent=0 // pred_check
    _
  $region3: #{benchmark_func_forward.1} parent=0 // pred_check_branch
    %7 = sbr.rel (0) target = $region5
  $region4: #{benchmark_func_forward.1} parent=0 // pred_region
    %s8 = sadd.s32 0, 0
    %p9 = scmp.lt.s32.totalorder %s8, 0
    %s10 = scalar_select %p9, %s8, 0
    %s11 = smul.addr %s10, 8
    %s12 = scalar_lea.vmem %s0, %s11
    %s13 = sadd.s32 0, 0
  $region5: #{benchmark_func_forward.1} parent=0 // pred_fallthru
    _
  %s14 = sadd.s32 0, 0
  %p15 = scmp.lt.s32.totalorder %s14, 0
  %s16 = scalar_select %p15, %s14, 0
  %s17 = smul.addr %s16, 8
  %s18 = scalar_lea.vmem %s0, %s17
  %s19 = sadd.s32 0, 0
  %p20 = scmp.lt.s32.totalorder %s19, 0
  %s21 = scalar_select %p20, %s19, 0
  %s22 = smul.addr %s21, 8
  %s23 = scalar_lea.vmem %s0, %s22
  %s24 = sadd.s32 0, 0
  %p25 = scmp.eq.s32.totalorder 0, 0
  // Predicated region
  $region6: #{benchmark_func_forward.1} parent=0 // pred_check
    %p26 = pneg %p25
  $region7: #{benchmark_func_forward.1} parent=0 // pred_check_branch
    %28 = sbr.rel (%p26) target = $region9
  $region8: #{benchmark_func_forward.1} parent=0 // pred_region
    %29 = vst [vmem:[%s1] sm:$0xff] 0.0
  $region9: #{benchmark_func_forward.1} parent=0 // pred_fallthru
    _
  %v30 = vld [vmem:[%s23] sm:$0xff]
  %31 = vrot.lane.b32.xlu0 %v30, 127
  %v32 = vpop.permute.xlu0 %31
  %v33 = vrot.slane %v32, 1
  %v34 = vlaneseq
  %v35 = vand.u32 %v34, 127
  %v36 = vlaneseq
  %v37 = vshrl.u32 %v36, 7
  %vm38 = vcmp.eq.s32.totalorder %v35, 127
  %v39 = vsel %vm38, %v33, %v32
  %v40 = vmul.f32 %v30, %v30
  %v41 = vsub.f32 %v39, %v40
  %v42 = vsub.f32 1.0, %v30
  %v43 = vmul.f32 %v41, %v41
  %v44 = vmul.f32 %v43, 100.0
  %v45 = vmul.f32 %v42, %v42
  %v46 = vadd.f32 %v44, %v45
  %s47 = sadd.s32 0, 0
  %s48 = smul.u32 %s47, 1024
  %v49 = vmul.u32 %v37, 128
  %v50 = vstv %s48
  %v51 = vadd.s32 %v50, %v49
  %v52 = vadd.s32 %v51, %v35
  %vm53 = vcmp.lt.s32.totalorder %v52, 127
  %v54 = vsel %vm53, %v46, 0.0
  %v55 = vld [vmem:[%s1] sm:$0xff]
  %v56 = vadd.f32 %v54, 0.0
  %v57 = vadd.f32 %v55, %v56
  %58 = vst [vmem:[%s1] sm:$0xff] %v57
  // Predicated region
  $region10: #{benchmark_func_forward.1} parent=0 // pred_check
    _
  $region11: #{benchmark_func_forward.1} parent=0 // pred_check_branch
    %60 = sbr.rel (0) target = $region13
  $region12: #{benchmark_func_forward.1} parent=0 // pred_region
    _
  $region13: #{benchmark_func_forward.1} parent=0 // pred_fallthru
    _
  // Predicated region
  $region14: #{benchmark_func_forward.1} parent=0 // pred_check
    _
  $region15: #{benchmark_func_forward.1} parent=0 // pred_check_branch
    %62 = sbr.rel (0) target = $region17
  $region16: #{benchmark_func_forward.1} parent=0 // pred_region
    _
  $region17: #{benchmark_func_forward.1} parent=0 // pred_fallthru
    _

</llo_original>
